<compile_context>
chip_gen: v5e
topology: v5e:2x2
jax: 0.10.0
libtpu: 0.0.40
codegen_flags: <defaults>
</compile_context>

<pallas_src>
import jax
import jax.numpy as jnp
from jax.experimental import pallas as pl
from jax.experimental.pallas import tpu as pltpu


def _ddg_kernel(xf_ref, xr_ref, w0_ref, b0_ref, w1_ref, b1_ref, wh_ref, out_ref):
    """Fused MLP + head for both branches on one batch tile.

    xf_ref, xr_ref : (TB, D_in)        f32
    w0_ref         : (D_in, H0)  bf16   b0_ref : (1, H0) f32
    w1_ref         : (H0,  H1)   bf16   b1_ref : (1, H1) f32
    wh_ref         : (1,   H1)   f32   (pre-scaled by 0.5; bh cancels exactly)
    out_ref        : (TB, 1)     f32
    """
    tb = xf_ref.shape[0]

    # One operand for both branches -> one matmul per layer.
    x = jnp.concatenate([xf_ref[...], xr_ref[...]], axis=0)           # (2*TB, D_in)

    # Layer 0: Linear + ReLU   (Dropout == identity in eval mode).
    h = jnp.dot(x.astype(jnp.bfloat16), w0_ref[...],
                preferred_element_type=jnp.float32)
    h = jnp.maximum(h + b0_ref[...], 0.0)

    # Layer 1: Linear + ReLU.
    h = jnp.dot(h.astype(jnp.bfloat16), w1_ref[...],
                preferred_element_type=jnp.float32)
    h = jnp.maximum(h + b1_ref[...], 0.0)                             # (2*TB, H1)

    # Head: (h_f - h_r) @ (0.5*wh)  ==  (head(h_f) - head(h_r)) / 2 exactly.
    # N=1 contraction on VPU (mul) + XLU (lane reduce) instead of the MXU.
    diff = h[:tb, :] - h[tb:, :]                                      # (TB, H1)
    out_ref[...] = jnp.sum(diff * wh_ref[...], axis=-1,
                           keepdims=True).astype(out_ref.dtype)


def ddg_predict(xf, xr, params):
    """Pallas-call wrapper: batch grid, VMEM-resident weights."""
    w0, b0, w1, b1, wh, bh = params
    B, d_in = xf.shape
    h0 = w0.shape[1]
    h1 = w1.shape[1]

    # Host-side prep (one-time exact rewrites / dtype prep):
    w0_bf = w0.astype(jnp.bfloat16)
    w1_bf = w1.astype(jnp.bfloat16)
    wh_half = (wh * 0.5).reshape(1, h1).astype(jnp.float32)   # bh cancels in (f - r)

    # Batch tile: large streaming tiles when B is big, single tile otherwise.
    tb = 512 if (B >= 512 and B % 512 == 0) else B
    nb = B // tb

    return pl.pallas_call(
        _ddg_kernel,
        out_shape=jax.ShapeDtypeStruct((B, 1), jnp.float32),
        grid=(nb,),
        in_specs=[
            pl.BlockSpec((tb, d_in), lambda i: (i, 0)),     # xf: blocked on batch
            pl.BlockSpec((tb, d_in), lambda i: (i, 0)),     # xr: blocked on batch
            pl.BlockSpec((d_in, h0), lambda i: (0, 0)),     # weights stay resident
            pl.BlockSpec((1, h0), lambda i: (0, 0)),
            pl.BlockSpec((h0, h1), lambda i: (0, 0)),
            pl.BlockSpec((1, h1), lambda i: (0, 0)),
            pl.BlockSpec((1, h1), lambda i: (0, 0)),
        ],
        out_specs=pl.BlockSpec((tb, 1), lambda i: (i, 0)),
        compiler_params=pltpu.CompilerParams(
            dimension_semantics=("parallel",)),             # v7x: both TCs
    )(xf, xr, w0_bf, b0, w1_bf, b1, wh_half)


def init_params(key, input_dim, hidden_dim, num_hidden):
    """Deterministic synthetic parameters matching DDGPredictor.__init__ shapes.

    Layer i output dim: hidden_dim if i == 0 else hidden_dim // 2**i.
    Weights stored as (in_dim, out_dim)  (PyTorch Linear.weight is (out, in)).
    """
    assert num_hidden == 2, "this script instantiates the num_hidden=2 case"
    dims = [input_dim]
    for i in range(num_hidden):
        dims.append(hidden_dim if i == 0 else hidden_dim // (2 ** i))

    keys = jax.random.split(key, 2 * num_hidden + 2)
    params = []
    for i in range(num_hidden):
        in_d, out_d = dims[i], dims[i + 1]
        w = jax.random.normal(keys[2 * i], (in_d, out_d), jnp.float32) * 0.1
        b = jax.random.normal(keys[2 * i + 1], (1, out_d), jnp.float32) * 0.1
        params += [w, b]
    # head: Linear(in_dim, 1)
    wh = jax.random.normal(keys[-2], (dims[-1], 1), jnp.float32) * 0.1
    bh = jax.random.normal(keys[-1], (1, 1), jnp.float32) * 0.1
    params += [wh, bh]
    return tuple(params)


def reference(xf, xr, params):
    """Plain-JAX f32 reference reproducing the PyTorch forward (eval mode)."""
    w0, b0, w1, b1, wh, bh = params

    def mlp_head(x):
        h = jnp.maximum(x @ w0 + b0, 0.0)
        h = jnp.maximum(h @ w1 + b1, 0.0)
        return h @ wh + bh

    return (mlp_head(xf) - mlp_head(xr)) / 2.0


if __name__ == "__main__":
    # Small shapes: batch=8, input_dim=32, hidden_dim=32, num_hidden=2
    # -> layer dims 32 -> 32 -> 16 -> head 16 -> 1.
    B, INPUT_DIM, HIDDEN_DIM, NUM_HIDDEN = 8, 32, 32, 2

    key = jax.random.PRNGKey(0)
    k_xf, k_xr, k_params = jax.random.split(key, 3)

    xf = jax.random.normal(k_xf, (B, INPUT_DIM), jnp.float32)
    xr = jax.random.normal(k_xr, (B, INPUT_DIM), jnp.float32)
    params = init_params(k_params, INPUT_DIM, HIDDEN_DIM, NUM_HIDDEN)

    out = jax.block_until_ready(ddg_predict(xf, xr, params))
    ref = reference(xf, xr, params)

    assert out.shape == (B, 1), out.shape
    # bf16 MXU inputs (f32 accumulate) -> slightly loosened tolerance vs the
    # all-f32 reference; the head rewrite itself is an exact identity.
    assert jnp.allclose(out, ref, atol=5e-3, rtol=5e-3), (out, ref)

    print("KERNEL_OK")
</pallas_src>

<mosaic_0001>
module attributes {stable_mosaic.version = 11 : i64} {
  func.func @_ddg_kernel(%arg0: i32, %arg1: memref<8x32xf32, #tpu.memory_space<vmem>>, %arg2: memref<8x32xf32, #tpu.memory_space<vmem>>, %arg3: memref<32x32xbf16, #tpu.memory_space<vmem>>, %arg4: memref<1x32xf32, #tpu.memory_space<vmem>>, %arg5: memref<32x16xbf16, #tpu.memory_space<vmem>>, %arg6: memref<1x16xf32, #tpu.memory_space<vmem>>, %arg7: memref<1x16xf32, #tpu.memory_space<vmem>>, %arg8: memref<8x1xf32, #tpu.memory_space<vmem>>) attributes {dimension_semantics = [#tpu.dimension_semantics<parallel>], iteration_bounds = array<i64: 1>, scalar_prefetch = 0 : i64, scratch_operands = 0 : i64, tpu.core_type = #tpu.core_type<tc>, window_params = [{transform_indices = @transform_0, window_bounds = array<i64: 8, 32>}, {transform_indices = @transform_1, window_bounds = array<i64: 8, 32>}, {pipeline_mode = #tpu.pipeline_mode<synchronous>, transform_indices = @transform_2, window_bounds = array<i64: 32, 32>}, {pipeline_mode = #tpu.pipeline_mode<synchronous>, transform_indices = @transform_3, window_bounds = array<i64: 1, 32>}, {pipeline_mode = #tpu.pipeline_mode<synchronous>, transform_indices = @transform_4, window_bounds = array<i64: 32, 16>}, {pipeline_mode = #tpu.pipeline_mode<synchronous>, transform_indices = @transform_5, window_bounds = array<i64: 1, 16>}, {pipeline_mode = #tpu.pipeline_mode<synchronous>, transform_indices = @transform_6, window_bounds = array<i64: 1, 16>}, {transform_indices = @transform_7, window_bounds = array<i64: 8, 1>}]} {
    %c0 = arith.constant 0 : index
    %c0_0 = arith.constant 0 : index
    %0 = vector.load %arg1[%c0, %c0_0] : memref<8x32xf32, #tpu.memory_space<vmem>>, vector<8x32xf32>
    %c0_1 = arith.constant 0 : index
    %c0_2 = arith.constant 0 : index
    %1 = vector.load %arg2[%c0_1, %c0_2] : memref<8x32xf32, #tpu.memory_space<vmem>>, vector<8x32xf32>
    %2 = tpu.concatenate %0, %1 in 0 : vector<8x32xf32>, vector<8x32xf32> -> vector<16x32xf32>
    %3 = arith.truncf %2 : vector<16x32xf32> to vector<16x32xbf16>
    %c0_3 = arith.constant 0 : index
    %c0_4 = arith.constant 0 : index
    %4 = vector.load %arg3[%c0_3, %c0_4] : memref<32x32xbf16, #tpu.memory_space<vmem>>, vector<32x32xbf16>
    %cst = arith.constant dense<0.000000e+00> : vector<16x32xf32>
    %5 = tpu.matmul %3, %4, %cst {dimension_numbers = #tpu.dot_dimension_numbers<[1], [0], [0], [1], [0, 0, 1, 1], [], []>} : vector<16x32xbf16>, vector<32x32xbf16>, vector<16x32xf32> -> vector<16x32xf32>
    %c0_5 = arith.constant 0 : index
    %c0_6 = arith.constant 0 : index
    %6 = vector.load %arg4[%c0_5, %c0_6] : memref<1x32xf32, #tpu.memory_space<vmem>>, vector<1x32xf32>
    %7 = vector.broadcast %6 : vector<1x32xf32> to vector<16x32xf32>
    %8 = arith.addf %5, %7 : vector<16x32xf32>
    %cst_7 = arith.constant 0.000000e+00 : f32
    %9 = vector.broadcast %cst_7 : f32 to vector<16x32xf32>
    %10 = arith.maximumf %8, %9 : vector<16x32xf32>
    %11 = arith.truncf %10 : vector<16x32xf32> to vector<16x32xbf16>
    %c0_8 = arith.constant 0 : index
    %c0_9 = arith.constant 0 : index
    %12 = vector.load %arg5[%c0_8, %c0_9] : memref<32x16xbf16, #tpu.memory_space<vmem>>, vector<32x16xbf16>
    %cst_10 = arith.constant dense<0.000000e+00> : vector<16x16xf32>
    %13 = tpu.matmul %11, %12, %cst_10 {dimension_numbers = #tpu.dot_dimension_numbers<[1], [0], [0], [1], [0, 0, 1, 1], [], []>} : vector<16x32xbf16>, vector<32x16xbf16>, vector<16x16xf32> -> vector<16x16xf32>
    %c0_11 = arith.constant 0 : index
    %c0_12 = arith.constant 0 : index
    %14 = vector.load %arg6[%c0_11, %c0_12] : memref<1x16xf32, #tpu.memory_space<vmem>>, vector<1x16xf32>
    %15 = vector.broadcast %14 : vector<1x16xf32> to vector<16x16xf32>
    %16 = arith.addf %13, %15 : vector<16x16xf32>
    %cst_13 = arith.constant 0.000000e+00 : f32
    %17 = vector.broadcast %cst_13 : f32 to vector<16x16xf32>
    %18 = arith.maximumf %16, %17 : vector<16x16xf32>
    %19 = vector.extract_strided_slice %18 {offsets = [0, 0], sizes = [8, 16], strides = [1, 1]} : vector<16x16xf32> to vector<8x16xf32>
    %20 = vector.extract_strided_slice %18 {offsets = [8, 0], sizes = [8, 16], strides = [1, 1]} : vector<16x16xf32> to vector<8x16xf32>
    %21 = arith.subf %19, %20 : vector<8x16xf32>
    %c0_14 = arith.constant 0 : index
    %c0_15 = arith.constant 0 : index
    %22 = vector.load %arg7[%c0_14, %c0_15] : memref<1x16xf32, #tpu.memory_space<vmem>>, vector<1x16xf32>
    %23 = vector.broadcast %22 : vector<1x16xf32> to vector<8x16xf32>
    %24 = arith.mulf %21, %23 : vector<8x16xf32>
    %cst_16 = arith.constant dense<0.000000e+00> : vector<8xf32>
    %25 = vector.multi_reduction <add>, %24, %cst_16 [1] : vector<8x16xf32> to vector<8xf32>
    %26 = vector.shape_cast %25 : vector<8xf32> to vector<8x1xf32>
    %c0_17 = arith.constant 0 : index
    %c0_18 = arith.constant 0 : index
    %27 = vector.load %arg8[%c0_17, %c0_18] : memref<8x1xf32, #tpu.memory_space<vmem>>, vector<8x1xf32>
    tpu.vector_store %arg8[%c0_17, %c0_18], %26 {strides = array<i32>} : memref<8x1xf32, #tpu.memory_space<vmem>>, vector<8x1xf32>,
    return
  }
  func.func @transform_0(%arg0: i32) -> (i32, i32) {
    %c0_i32 = arith.constant 0 : i32
    %c0_i32_0 = arith.constant 0 : i32
    return %arg0, %c0_i32 : i32, i32
  }
  func.func @transform_1(%arg0: i32) -> (i32, i32) {
    %c0_i32 = arith.constant 0 : i32
    %c0_i32_0 = arith.constant 0 : i32
    return %arg0, %c0_i32 : i32, i32
  }
  func.func @transform_2(%arg0: i32) -> (i32, i32) {
    %c0_i32 = arith.constant 0 : i32
    %c0_i32_0 = arith.constant 0 : i32
    %c0_i32_1 = arith.constant 0 : i32
    return %c0_i32, %c0_i32_0 : i32, i32
  }
  func.func @transform_3(%arg0: i32) -> (i32, i32) {
    %c0_i32 = arith.constant 0 : i32
    %c0_i32_0 = arith.constant 0 : i32
    %c0_i32_1 = arith.constant 0 : i32
    return %c0_i32, %c0_i32_0 : i32, i32
  }
  func.func @transform_4(%arg0: i32) -> (i32, i32) {
    %c0_i32 = arith.constant 0 : i32
    %c0_i32_0 = arith.constant 0 : i32
    %c0_i32_1 = arith.constant 0 : i32
    return %c0_i32, %c0_i32_0 : i32, i32
  }
  func.func @transform_5(%arg0: i32) -> (i32, i32) {
    %c0_i32 = arith.constant 0 : i32
    %c0_i32_0 = arith.constant 0 : i32
    %c0_i32_1 = arith.constant 0 : i32
    return %c0_i32, %c0_i32_0 : i32, i32
  }
  func.func @transform_6(%arg0: i32) -> (i32, i32) {
    %c0_i32 = arith.constant 0 : i32
    %c0_i32_0 = arith.constant 0 : i32
    %c0_i32_1 = arith.constant 0 : i32
    return %c0_i32, %c0_i32_0 : i32, i32
  }
  func.func @transform_7(%arg0: i32) -> (i32, i32) {
    %c0_i32 = arith.constant 0 : i32
    %c0_i32_0 = arith.constant 0 : i32
    return %arg0, %c0_i32 : i32, i32
  }
}

</mosaic_0001>

<llo_original>
// kernel: tpu_custom_call.1
$region0: #{tpu_custom_call.1}
  #allocation0 [shape = 'u32[]', space=smem, size = 0x4, offset = 0x4, fixed_abs, tag = 'smem constant byte address 0x4 - core index']
  #allocation1 [shape = 'u32[72,128]{1,0:T(1,128)}', space=vmem, size = 0x9000, scoped, tag = 'internal scratch']
  %s0 = inlined_call_operand.vmem [shape: f32[8,32], index: 0, kind: input, shape index: {}]
  %s1 = inlined_call_operand.hbm [shape: f32[8,32], index: 1, kind: input, shape index: {}]
  %s2 = inlined_call_operand.vmem [shape: bf16[32,32], index: 2, kind: input, shape index: {}]
  %s3 = inlined_call_operand.vmem [shape: f32[1,32], index: 3, kind: input, shape index: {}]
  %s4 = inlined_call_operand.vmem [shape: bf16[32,16], index: 4, kind: input, shape index: {}]
  %s5 = inlined_call_operand.vmem [shape: f32[1,16], index: 5, kind: input, shape index: {}]
  %s6 = inlined_call_operand.vmem [shape: f32[1,16], index: 6, kind: input, shape index: {}]
  %s7 = inlined_call_operand.vmem [shape: f32[8,1], index: 7, kind: output, shape index: {}]
  %s8 = sld [smem:[#allocation0]]
  $region42: #{tpu_custom_call.1} parent=0
    _
  %s10 = ssub.s32 1, %s8
  %s11 = scalar_select 0, %s10, %s8
  $region1: #{tpu_custom_call.1} parent=0
    #allocation2 [shape = 'u8[4096]{0}', space=vmem, size = 0x1000, scoped, tag = 'input window, operand 1, single buffered']
    #allocation3 [shape = 's32[1]{0}', space=sflag, size = 0x4, scoped, tag = 'scoped memory for tpu_custom_call.1']
    %12 = vsyncpa [#allocation3], 0
    // Predicated region
    $region2: #{tpu_custom_call.1} parent=1 // pred_check
      _
    $region3: #{tpu_custom_call.1} parent=1 // pred_check_branch
      %14 = sbr.rel (0) target = $region5
    $region4: #{tpu_custom_call.1} parent=1 // pred_region
      _
    $region5: #{tpu_custom_call.1} parent=1 // pred_fallthru
      _
    // Predicated region
    $region6: #{tpu_custom_call.1} parent=1 // pred_check
      _
    $region7: #{tpu_custom_call.1} parent=1 // pred_check_branch
      %16 = sbr.rel (0) target = $region9
    $region8: #{tpu_custom_call.1} parent=1 // pred_region
      %18 = vsyncadd [#allocation3], 0
      %s20 = sshll.u32 %s1, 4
      %s21 = int_to_ptr.hbm [resolvable:$true] %s20
      %s22 = sshll.u32 [#allocation2], 4
      %s23 = int_to_ptr.vmem [resolvable:$true] %s22
      %25 = dma.hbm_to_vmem [thread:$0]  %s21, 128, %s23, [#allocation3]
    $region9: #{tpu_custom_call.1} parent=1 // pred_fallthru
      _
    // Predicated region
    $region10: #{tpu_custom_call.1} parent=1 // pred_check
      _
    $region11: #{tpu_custom_call.1} parent=1 // pred_check_branch
      %27 = sbr.rel (0) target = $region13
    $region12: #{tpu_custom_call.1} parent=1 // pred_region
      _
    $region13: #{tpu_custom_call.1} parent=1 // pred_fallthru
      _
    // Predicated region
    $region14: #{tpu_custom_call.1} parent=1 // pred_check
      _
    $region15: #{tpu_custom_call.1} parent=1 // pred_check_branch
      %29 = sbr.rel (0) target = $region17
    $region16: #{tpu_custom_call.1} parent=1 // pred_region
      _
    $region17: #{tpu_custom_call.1} parent=1 // pred_fallthru
      _
    // Predicated region
    $region18: #{tpu_custom_call.1} parent=1 // pred_check
      _
    $region19: #{tpu_custom_call.1} parent=1 // pred_check_branch
      %31 = sbr.rel (0) target = $region21
    $region20: #{tpu_custom_call.1} parent=1 // pred_region
      _
    $region21: #{tpu_custom_call.1} parent=1 // pred_fallthru
      _
    // Predicated region
    $region22: #{tpu_custom_call.1} parent=1 // pred_check
      _
    $region23: #{tpu_custom_call.1} parent=1 // pred_check_branch
      %33 = sbr.rel (0) target = $region25
    $region24: #{tpu_custom_call.1} parent=1 // pred_region
      _
    $region25: #{tpu_custom_call.1} parent=1 // pred_fallthru
      _
    // Predicated region
    $region26: #{tpu_custom_call.1} parent=1 // pred_check
      _
    $region27: #{tpu_custom_call.1} parent=1 // pred_check_branch
      %35 = sbr.rel (0) target = $region29
    $region28: #{tpu_custom_call.1} parent=1 // pred_region
      _
    $region29: #{tpu_custom_call.1} parent=1 // pred_fallthru
      _
    // Predicated region
    $region30: #{tpu_custom_call.1} parent=1 // pred_check
      _
    $region31: #{tpu_custom_call.1} parent=1 // pred_check_branch
      %37 = sbr.rel (0) target = $region33
    $region32: #{tpu_custom_call.1} parent=1 // pred_region
      %39 = dma.done [#allocation3], 128
    $region33: #{tpu_custom_call.1} parent=1 // pred_fallthru
      _
    %v41 = vld [vmem:[%s0] sm:$0xff]
    %v42 = vld [vmem:[#allocation2] sm:$0xff]
    %v43 = vpack.c.bf16 %v42, %v41
    %v44 = vld [vmem:[%s2] sm:$0xf]
    %v45 = vld [vmem:[%s2 + $0x4] sm:$0xf]
    %v46 = vld [vmem:[%s2 + $0x8] sm:$0xf]
    %v47 = vld [vmem:[%s2 + $0xc] sm:$0xf]
    %v48 = vld [vmem:[%s3] sm:$0x1]
    %v50 = vperm.slane %v48, 0
    %v56 = vunpack.c.l.b16 %v44
    %v57 = vunpack.c.l.b16 %v45
    %v58 = vunpack.c.l.b16 %v46
    %v59 = vunpack.c.l.b16 %v47
    %v60 = vpack.c.b16 %v57, %v56
    %v61 = vpack.c.b16 %v59, %v58
    %vm64 = vcmask 261120
    %v66 = vsel %vm64, %v43, 0
    %68 = vmatpush.bf16.msra.mxu0 0
    %69 = vmatpush.bf16.msra.mxu0 0
    %70 = vmatpush.bf16.msra.mxu0 0
    %71 = vmatpush.bf16.msra.mxu0 0
    %72 = vmatpush.bf16.msra.mxu0 0
    %73 = vmatpush.bf16.msra.mxu0 0
    %74 = vmatpush.bf16.msra.mxu0 %v61
    %75 = vmatpush.bf16.msra.mxu0 %v60
    %76 = vmatmul.bf16.gmra.mxu0 %v66
    %v77 = vpop.f32.mrf.mxu0
    %v78 = vadd.f32 %v50, %v77
    %v79 = vpop.f32.mrf.mxu0
    %v80 = vadd.f32 %v50, %v79
    %81 = vdwg.mxu0
    %v82 = vmax.f32 %v78, 0.0
    %v83 = vmax.f32 %v80, 0.0
    %v84 = vpack.c.bf16 %v83, %v82
    %v85 = vld [vmem:[%s4] sm:$0xf]
    %v86 = vld [vmem:[%s4 + $0x4] sm:$0xf]
    %v87 = vld [vmem:[%s4 + $0x8] sm:$0xf]
    %v88 = vld [vmem:[%s4 + $0xc] sm:$0xf]
    %v89 = vld [vmem:[%s5] sm:$0x1]
    %v91 = vperm.slane %v89, 0
    %v97 = vunpack.c.l.b16 %v85
    %v98 = vunpack.c.l.b16 %v86
    %v99 = vunpack.c.l.b16 %v87
    %v100 = vunpack.c.l.b16 %v88
    %v101 = vpack.c.b16 %v98, %v97
    %v102 = vpack.c.b16 %v100, %v99
    %v106 = vsel %vm64, %v84, 0
    %108 = vmatpush.bf16.msra.mxu0 0
    %109 = vmatpush.bf16.msra.mxu0 0
    %110 = vmatpush.bf16.msra.mxu0 0
    %111 = vmatpush.bf16.msra.mxu0 0
    %112 = vmatpush.bf16.msra.mxu0 0
    %113 = vmatpush.bf16.msra.mxu0 0
    %114 = vmatpush.bf16.msra.mxu0 %v102
    %115 = vmatpush.bf16.msra.mxu0 %v101
    %116 = vmatmul.bf16.gmra.mxu0 %v106
    %v117 = vpop.f32.mrf.mxu0
    %v118 = vadd.f32 %v91, %v117
    %v119 = vpop.f32.mrf.mxu0
    %v120 = vadd.f32 %v91, %v119
    %121 = vdwg.mxu0
    %v122 = vmax.f32 %v118, 0.0
    %v123 = vmax.f32 %v120, 0.0
    %v124 = vsub.f32 %v122, %v123
    %v125 = vld [vmem:[%s6] sm:$0x1]
    %v127 = vperm.slane %v125, 0
    %v129 = vmul.f32 %v124, %v127
    %vm130 = vcmask 130048
    %v131 = vsel %vm130, %v129, 0.0
    %132 = vadd.xlane.f32.xlu0 %v131
    %v133 = vpop.xlane.xlu0 %132
    %vm134 = vcmask 7168
    %135 = vst.msk [vmem:[%s7] sm:$0xff] %vm134, %v133
    // Predicated region
    $region34: #{tpu_custom_call.1} parent=1 // pred_check
      _
    $region35: #{tpu_custom_call.1} parent=1 // pred_check_branch
      %137 = sbr.rel (0) target = $region37
    $region36: #{tpu_custom_call.1} parent=1 // pred_region
      _
    $region37: #{tpu_custom_call.1} parent=1 // pred_fallthru
      _
    // Predicated region
    $region38: #{tpu_custom_call.1} parent=1 // pred_check
      _
    $region39: #{tpu_custom_call.1} parent=1 // pred_check_branch
      %139 = sbr.rel (0) target = $region41
    $region40: #{tpu_custom_call.1} parent=1 // pred_region
      _
    $region41: #{tpu_custom_call.1} parent=1 // pred_fallthru
      _
    %140 = vsyncpa [#allocation3], 1

</llo_original>
